<compile_context>
chip_gen: v5e
topology: v5e:2x2
jax: 0.10.0
libtpu: 0.0.40
codegen_flags: <defaults>
</compile_context>

<pallas_src>
import math
import functools

import jax
import jax.numpy as jnp
from jax import lax
from jax.experimental import pallas as pl
from jax.experimental.pallas import tpu as pltpu

_LANES = 128
_SUBLANES = 8
_BLOCK_ROWS = 4096               # (4096,128) f32 block = 2 MiB / input / step
_VMEM_LIMIT_BYTES = 32 * 1024 * 1024


# ---------------------------------------------------------------------------
# Fused kernel: one grid, three segments (log y | log z | squared error)
# ---------------------------------------------------------------------------
def _fused_rd_kernel(y_ref, z_ref, xh_ref, tg_ref, out_ref,
                     acc_y_ref, acc_z_ref, acc_m_ref, *, segs):
    """segs = ((start, nblk, rows, block_rows) for y, z, mse) — all static ints."""
    i = pl.program_id(0)

    @pl.when(i == 0)
    def _init():
        acc_y_ref[...] = jnp.zeros_like(acc_y_ref)
        acc_z_ref[...] = jnp.zeros_like(acc_z_ref)
        acc_m_ref[...] = jnp.zeros_like(acc_m_ref)

    def partial_sum(vals):
        # (block_rows,128) -> (block_rows/8, 8, 128) -> (8,128): the reshape is
        # tile-aligned (no relayout) and the reduce is pure VPU vreg adds; the
        # single cross-lane reduce happens only in the epilogue.
        return vals.reshape(-1, _SUBLANES, _LANES).sum(axis=0)

    def mask_rows(vals, rows_rem, fill):
        # Only emitted for the (statically known) ragged last block of a segment.
        row = lax.broadcasted_iota(jnp.int32, vals.shape, 0)
        return jnp.where(row < rows_rem, vals, fill)

    def log_segment(x_ref, acc_ref, seg):
        start, nblk, rows, block_rows = seg
        last = start + nblk - 1
        rows_rem = rows - (nblk - 1) * block_rows

        if nblk > 1:
            @pl.when((i >= start) & (i < last))
            def _steady():
                acc_ref[...] += partial_sum(
                    jnp.log(x_ref[...].astype(jnp.float32)))

        @pl.when(i == last)
        def _last():
            x = x_ref[...].astype(jnp.float32)
            if rows_rem != block_rows:           # ragged block (static decision)
                x = mask_rows(x, rows_rem, 1.0)  # log(1) == 0 -> neutral
            acc_ref[...] += partial_sum(jnp.log(x))

    def mse_segment(seg):
        start, nblk, rows, block_rows = seg
        last = start + nblk - 1
        rows_rem = rows - (nblk - 1) * block_rows

        def sq_diff():
            d = xh_ref[...].astype(jnp.float32) - tg_ref[...].astype(jnp.float32)
            return d * d

        if nblk > 1:
            @pl.when((i >= start) & (i < last))
            def _steady():
                acc_m_ref[...] += partial_sum(sq_diff())

        @pl.when(i == last)
        def _last():
            v = sq_diff()
            if rows_rem != block_rows:
                v = mask_rows(v, rows_rem, 0.0)
            acc_m_ref[...] += partial_sum(v)

    seg_y, seg_z, seg_m = segs
    log_segment(y_ref, acc_y_ref, seg_y)
    log_segment(z_ref, acc_z_ref, seg_z)
    mse_segment(seg_m)

    @pl.when(i == pl.num_programs(0) - 1)
    def _epilogue():
        out_ref[0] = jnp.sum(acc_y_ref[...])
        out_ref[1] = jnp.sum(acc_z_ref[...])
        out_ref[2] = jnp.sum(acc_m_ref[...])


# ---------------------------------------------------------------------------
# Wrapper: slab prep, segment geometry, pallas_call
# ---------------------------------------------------------------------------
def _round_up(n, m):
    return (n + m - 1) // m * m


def _to_slab(x, fill):
    """Flatten to (rows, 128) in native dtype.

    Zero-copy (bitcast reshape) when numel % 128 == 0 (the usual case for image
    tensors).  Otherwise pads the <128-element tail with the reduction-neutral
    value `fill`, which costs one extra HBM copy of this tensor.
    TODO(synk): split-tail or 1-D-blocked path to make the ragged case zero-copy.
    """
    flat = jnp.ravel(x)
    n = flat.shape[0]
    rows = pl.cdiv(n, _LANES)
    pad = rows * _LANES - n
    if pad:
        flat = jnp.pad(flat, (0, pad), constant_values=fill)
    return flat.reshape(rows, _LANES)


def _segment_cfg(rows, start, block_cap):
    block_rows = min(block_cap, _round_up(rows, _SUBLANES))
    nblk = pl.cdiv(rows, block_rows)
    return (start, nblk, rows, block_rows), start + nblk


def _clamped_spec(seg):
    start, nblk, _rows, block_rows = seg

    def index_map(i):
        # Clamp outside this segment; consecutive equal block indices let Pallas
        # skip the DMA, so inactive segments cost at most one warm-up fetch.
        return (jnp.clip(i - start, 0, nblk - 1), 0)

    return pl.BlockSpec((block_rows, _LANES), index_map)


def _fused_sums_impl(y, z, x_hat, target, *, block_cap=_BLOCK_ROWS):
    slab_y = _to_slab(y, 1.0)
    slab_z = _to_slab(z, 1.0)
    slab_xh = _to_slab(x_hat, 0.0)
    slab_tg = _to_slab(target, 0.0)

    seg_y, nxt = _segment_cfg(slab_y.shape[0], 0, block_cap)
    seg_z, nxt = _segment_cfg(slab_z.shape[0], nxt, block_cap)
    seg_m, total = _segment_cfg(slab_xh.shape[0], nxt, block_cap)

    n_log = slab_y.size + slab_z.size
    cost = pl.CostEstimate(
        flops=3 * slab_xh.size + n_log,
        transcendentals=n_log,
        bytes_accessed=sum(int(s.size) * s.dtype.itemsize
                           for s in (slab_y, slab_z, slab_xh, slab_tg)))

    out = pl.pallas_call(
        functools.partial(_fused_rd_kernel, segs=(seg_y, seg_z, seg_m)),
        out_shape=jax.ShapeDtypeStruct((3,), jnp.float32),
        grid_spec=pltpu.PrefetchScalarGridSpec(
            num_scalar_prefetch=0,
            grid=(total,),
            in_specs=[_clamped_spec(seg_y), _clamped_spec(seg_z),
                      _clamped_spec(seg_m), _clamped_spec(seg_m)],
            out_specs=pl.BlockSpec(memory_space=pltpu.SMEM),
            scratch_shapes=[pltpu.VMEM((_SUBLANES, _LANES), jnp.float32)
                            for _ in range(3)],
        ),
        compiler_params=pltpu.CompilerParams(
            dimension_semantics=("arbitrary",),
            vmem_limit_bytes=_VMEM_LIMIT_BYTES),
        cost_estimate=cost,
    )(slab_y, slab_z, slab_xh, slab_tg)
    return out[0], out[1], out[2]


# ---------------------------------------------------------------------------
# Differentiable wrapper (pallas_call has no autodiff rule)
# ---------------------------------------------------------------------------
@jax.custom_vjp
def _fused_sums(y, z, x_hat, target):
    """Returns (sum(log y), sum(log z), sum((x_hat - target)^2))."""
    return _fused_sums_impl(y, z, x_hat, target)


def _fused_sums_fwd(y, z, x_hat, target):
    return _fused_sums_impl(y, z, x_hat, target), (y, z, x_hat, target)


def _fused_sums_bwd(res, g):
    y, z, x_hat, target = res
    gy, gz, gm = g
    dy = (gy / y.astype(jnp.float32)).astype(y.dtype)
    dz = (gz / z.astype(jnp.float32)).astype(z.dtype)
    d = (x_hat.astype(jnp.float32) - target.astype(jnp.float32)) * (2.0 * gm)
    return dy, dz, d.astype(x_hat.dtype), (-d).astype(target.dtype)


_fused_sums.defvjp(_fused_sums_fwd, _fused_sums_bwd)


# ---------------------------------------------------------------------------
# RateDistortionLoss forward (mirrors the PyTorch module)
# ---------------------------------------------------------------------------
def rate_distortion_loss(output, target, lmbda=0.01, metrics='mse'):
    """output: {'x_hat': (N,C,H,W), 'likelihoods': {'y': ..., 'z': ...}}"""
    N, _, H, W = target.shape
    num_pixels = N * H * W
    inv_neg_log2_np = 1.0 / (-math.log(2) * num_pixels)

    lik = output['likelihoods']
    if any(k not in ('y', 'z') for k in lik):
        # TODO(synk): the fused kernel handles the standard {'y','z'} hyperprior
        #             case; extra likelihood tensors would need extra segments.
        raise NotImplementedError("only likelihood keys {'y','z'} are supported")

    x_hat = output['x_hat']
    sum_log_y, sum_log_z, sum_sq = _fused_sums(lik['y'], lik['z'], x_hat, target)

    out = {}
    out['bpp_y'] = sum_log_y * inv_neg_log2_np
    out['bpp_z'] = sum_log_z * inv_neg_log2_np
    out['bpp_loss'] = out['bpp_y'] + out['bpp_z']

    if metrics == 'mse':
        n_elem = math.prod(int(s) for s in x_hat.shape)
        out['mse_loss'] = sum_sq / float(n_elem)
        out['ms_ssim_loss'] = None
        out['loss'] = lmbda * (255 ** 2) * out['mse_loss'] + out['bpp_loss']
    elif metrics == 'ms-ssim':
        # TODO(synk): ms_ssim (multi-scale SSIM with gaussian pyramid) not ported.
        raise NotImplementedError("metrics='ms-ssim' is not implemented in the Pallas port")
    else:
        raise ValueError(f"unknown metrics: {metrics}")
    return out


# ---------------------------------------------------------------------------
# Demo / smoke test
# ---------------------------------------------------------------------------
if __name__ == "__main__":
    key = jax.random.PRNGKey(0)
    k1, k2, k3, k4, k5, k6, k7, k8 = jax.random.split(key, 8)

    # ---- primary example: small, image-shaped tensors ----------------------
    N, C, H, W = 2, 3, 16, 16
    target = jax.random.uniform(k1, (N, C, H, W), dtype=jnp.float32)
    x_hat = jnp.clip(target + 0.05 * jax.random.normal(k2, (N, C, H, W)), 0.0, 1.0)
    lik_y = jax.random.uniform(k3, (N, 8, H // 2, W // 2), dtype=jnp.float32,
                               minval=0.01, maxval=1.0)
    lik_z = jax.random.uniform(k4, (N, 8, H // 4, W // 4), dtype=jnp.float32,
                               minval=0.01, maxval=1.0)

    output = {'x_hat': x_hat, 'likelihoods': {'y': lik_y, 'z': lik_z}}
    res = rate_distortion_loss(output, target, lmbda=0.01, metrics='mse')
    jax.block_until_ready(res['loss'])

    num_pixels = N * H * W
    ref_bpp_y = jnp.sum(jnp.log(lik_y)) / (-math.log(2) * num_pixels)
    ref_bpp_z = jnp.sum(jnp.log(lik_z)) / (-math.log(2) * num_pixels)
    ref_mse = jnp.mean((x_hat - target) ** 2)
    ref_loss = 0.01 * 255 ** 2 * ref_mse + ref_bpp_y + ref_bpp_z

    assert jnp.allclose(res['bpp_y'], ref_bpp_y, rtol=1e-5, atol=1e-6)
    assert jnp.allclose(res['bpp_z'], ref_bpp_z, rtol=1e-5, atol=1e-6)
    assert jnp.allclose(res['mse_loss'], ref_mse, rtol=1e-5, atol=1e-7)
    assert jnp.allclose(res['loss'], ref_loss, rtol=1e-5, atol=1e-6)

    # ---- multi-block / ragged / clamped-segment / bf16 path ----------------
    # Block cap reduced so small test data exercises the same code paths as
    # large tensors: multi-block segments, unmasked steady-state blocks,
    # ragged last blocks, non-128-aligned numel, bf16 in-kernel upcast.
    by = jax.random.uniform(k5, (1, 9, 61, 64), minval=0.01, maxval=1.0
                            ).astype(jnp.bfloat16)        # 35136 elems (misaligned)
    bz = jax.random.uniform(k6, (1, 4, 16, 16), dtype=jnp.float32,
                            minval=0.01, maxval=1.0)       # 1024 elems
    bt = jax.random.uniform(k7, (1, 3, 64, 80), dtype=jnp.float32)  # 15360 elems
    bx = jnp.clip(bt + 0.1 * jax.random.normal(k8, bt.shape), 0.0, 1.0)

    s_y, s_z, s_m = _fused_sums_impl(by, bz, bx, bt, block_cap=64)
    jax.block_until_ready(s_m)
    ref_y = jnp.sum(jnp.log(by.astype(jnp.float32)))
    ref_z = jnp.sum(jnp.log(bz))
    ref_m = jnp.sum((bx - bt) ** 2)
    assert jnp.allclose(s_y, ref_y, rtol=1e-4, atol=5e-2)
    assert jnp.allclose(s_z, ref_z, rtol=1e-4, atol=1e-2)
    assert jnp.allclose(s_m, ref_m, rtol=1e-4, atol=1e-2)

    # ---- gradient path (custom_vjp makes the loss trainable) ---------------
    def loss_fn(xh):
        return rate_distortion_loss({'x_hat': xh,
                                     'likelihoods': {'y': lik_y, 'z': lik_z}},
                                    target, lmbda=0.01, metrics='mse')['loss']

    g = jax.grad(loss_fn)(x_hat)
    g_ref = jax.grad(lambda xh: 0.01 * 255 ** 2 * jnp.mean((xh - target) ** 2))(x_hat)
    assert jnp.allclose(g, g_ref, rtol=1e-4, atol=1e-6)

    print("KERNEL_OK")
</pallas_src>

<mosaic_0001>
module attributes {stable_mosaic.version = 11 : i64} {
  func.func @_fused_rd_kernel(%arg0: i32, %arg1: memref<8x128xf32, #tpu.memory_space<vmem>>, %arg2: memref<8x128xf32, #tpu.memory_space<vmem>>, %arg3: memref<16x128xf32, #tpu.memory_space<vmem>>, %arg4: memref<16x128xf32, #tpu.memory_space<vmem>>, %arg5: memref<3xf32, #tpu.memory_space<smem>>, %arg6: memref<8x128xf32, #tpu.memory_space<vmem>>, %arg7: memref<8x128xf32, #tpu.memory_space<vmem>>, %arg8: memref<8x128xf32, #tpu.memory_space<vmem>>) attributes {dimension_semantics = [#tpu.dimension_semantics<arbitrary>], iteration_bounds = array<i64: 3>, scalar_prefetch = 0 : i64, scratch_operands = 3 : i64, tpu.core_type = #tpu.core_type<tc>, window_params = [{transform_indices = @transform_0, window_bounds = array<i64: 8, 128>}, {transform_indices = @transform_1, window_bounds = array<i64: 8, 128>}, {transform_indices = @transform_2, window_bounds = array<i64: 16, 128>}, {transform_indices = @transform_3, window_bounds = array<i64: 16, 128>}, {transform_indices = @transform_4, window_bounds = array<i64: 3>}]} {
    %c0_i32 = arith.constant 0 : i32
    %0 = arith.cmpi eq, %arg0, %c0_i32 : i32
    %1 = arith.extui %0 : i1 to i32
    %c0_i32_0 = arith.constant 0 : i32
    %2 = arith.cmpi ne, %1, %c0_i32_0 : i32
    scf.if %2 {
      %cst = arith.constant 0.000000e+00 : f32
      %15 = vector.broadcast %cst : f32 to vector<8x128xf32>
      %c0 = arith.constant 0 : index
      %c0_7 = arith.constant 0 : index
      %16 = vector.load %arg6[%c0, %c0_7] : memref<8x128xf32, #tpu.memory_space<vmem>>, vector<8x128xf32>
      tpu.vector_store %arg6[%c0, %c0_7], %15 {strides = array<i32>} : memref<8x128xf32, #tpu.memory_space<vmem>>, vector<8x128xf32>,
      %cst_8 = arith.constant 0.000000e+00 : f32
      %17 = vector.broadcast %cst_8 : f32 to vector<8x128xf32>
      %c0_9 = arith.constant 0 : index
      %c0_10 = arith.constant 0 : index
      %18 = vector.load %arg7[%c0_9, %c0_10] : memref<8x128xf32, #tpu.memory_space<vmem>>, vector<8x128xf32>
      tpu.vector_store %arg7[%c0_9, %c0_10], %17 {strides = array<i32>} : memref<8x128xf32, #tpu.memory_space<vmem>>, vector<8x128xf32>,
      %cst_11 = arith.constant 0.000000e+00 : f32
      %19 = vector.broadcast %cst_11 : f32 to vector<8x128xf32>
      %c0_12 = arith.constant 0 : index
      %c0_13 = arith.constant 0 : index
      %20 = vector.load %arg8[%c0_12, %c0_13] : memref<8x128xf32, #tpu.memory_space<vmem>>, vector<8x128xf32>
      tpu.vector_store %arg8[%c0_12, %c0_13], %19 {strides = array<i32>} : memref<8x128xf32, #tpu.memory_space<vmem>>, vector<8x128xf32>,
    } else {
    }
    %c0_i32_1 = arith.constant 0 : i32
    %3 = arith.cmpi eq, %arg0, %c0_i32_1 : i32
    %4 = arith.extui %3 : i1 to i32
    %c0_i32_2 = arith.constant 0 : i32
    %5 = arith.cmpi ne, %4, %c0_i32_2 : i32
    scf.if %5 {
      %c0 = arith.constant 0 : index
      %c0_7 = arith.constant 0 : index
      %15 = vector.load %arg1[%c0, %c0_7] : memref<8x128xf32, #tpu.memory_space<vmem>>, vector<8x128xf32>
      %c0_8 = arith.constant 0 : index
      %c0_9 = arith.constant 0 : index
      %16 = vector.load %arg6[%c0_8, %c0_9] : memref<8x128xf32, #tpu.memory_space<vmem>>, vector<8x128xf32>
      %17 = math.log %15 : vector<8x128xf32>
      %18 = vector.shape_cast %17 : vector<8x128xf32> to vector<1x8x128xf32>
      %cst = arith.constant dense<0.000000e+00> : vector<8x128xf32>
      %19 = vector.multi_reduction <add>, %18, %cst [0] : vector<1x8x128xf32> to vector<8x128xf32>
      %20 = arith.addf %16, %19 : vector<8x128xf32>
      %c0_10 = arith.constant 0 : index
      %c0_11 = arith.constant 0 : index
      %21 = vector.load %arg6[%c0_10, %c0_11] : memref<8x128xf32, #tpu.memory_space<vmem>>, vector<8x128xf32>
      tpu.vector_store %arg6[%c0_10, %c0_11], %20 {strides = array<i32>} : memref<8x128xf32, #tpu.memory_space<vmem>>, vector<8x128xf32>,
    } else {
    }
    %c1_i32 = arith.constant 1 : i32
    %6 = arith.cmpi eq, %arg0, %c1_i32 : i32
    %7 = arith.extui %6 : i1 to i32
    %c0_i32_3 = arith.constant 0 : i32
    %8 = arith.cmpi ne, %7, %c0_i32_3 : i32
    scf.if %8 {
      %c0 = arith.constant 0 : index
      %c0_7 = arith.constant 0 : index
      %15 = vector.load %arg2[%c0, %c0_7] : memref<8x128xf32, #tpu.memory_space<vmem>>, vector<8x128xf32>
      %16 = tpu.iota {dimensions = array<i32: 0>} : vector<8x128xi32>
      %c2_i32_8 = arith.constant 2 : i32
      %17 = vector.broadcast %c2_i32_8 : i32 to vector<8x128xi32>
      %18 = arith.cmpi slt, %16, %17 : vector<8x128xi32>
      %cst = arith.constant 1.000000e+00 : f32
      %19 = vector.broadcast %cst : f32 to vector<8x128xf32>
      %20 = arith.select %18, %15, %19 : vector<8x128xi1>, vector<8x128xf32>
      %c0_9 = arith.constant 0 : index
      %c0_10 = arith.constant 0 : index
      %21 = vector.load %arg7[%c0_9, %c0_10] : memref<8x128xf32, #tpu.memory_space<vmem>>, vector<8x128xf32>
      %22 = math.log %20 : vector<8x128xf32>
      %23 = vector.shape_cast %22 : vector<8x128xf32> to vector<1x8x128xf32>
      %cst_11 = arith.constant dense<0.000000e+00> : vector<8x128xf32>
      %24 = vector.multi_reduction <add>, %23, %cst_11 [0] : vector<1x8x128xf32> to vector<8x128xf32>
      %25 = arith.addf %21, %24 : vector<8x128xf32>
      %c0_12 = arith.constant 0 : index
      %c0_13 = arith.constant 0 : index
      %26 = vector.load %arg7[%c0_12, %c0_13] : memref<8x128xf32, #tpu.memory_space<vmem>>, vector<8x128xf32>
      tpu.vector_store %arg7[%c0_12, %c0_13], %25 {strides = array<i32>} : memref<8x128xf32, #tpu.memory_space<vmem>>, vector<8x128xf32>,
    } else {
    }
    %c2_i32 = arith.constant 2 : i32
    %9 = arith.cmpi eq, %arg0, %c2_i32 : i32
    %10 = arith.extui %9 : i1 to i32
    %c0_i32_4 = arith.constant 0 : i32
    %11 = arith.cmpi ne, %10, %c0_i32_4 : i32
    scf.if %11 {
      %c0 = arith.constant 0 : index
      %c0_7 = arith.constant 0 : index
      %15 = vector.load %arg3[%c0, %c0_7] : memref<16x128xf32, #tpu.memory_space<vmem>>, vector<16x128xf32>
      %c0_8 = arith.constant 0 : index
      %c0_9 = arith.constant 0 : index
      %16 = vector.load %arg4[%c0_8, %c0_9] : memref<16x128xf32, #tpu.memory_space<vmem>>, vector<16x128xf32>
      %17 = arith.subf %15, %16 : vector<16x128xf32>
      %18 = arith.mulf %17, %17 : vector<16x128xf32>
      %19 = tpu.iota {dimensions = array<i32: 0>} : vector<16x128xi32>
      %c12_i32 = arith.constant 12 : i32
      %20 = vector.broadcast %c12_i32 : i32 to vector<16x128xi32>
      %21 = arith.cmpi slt, %19, %20 : vector<16x128xi32>
      %cst = arith.constant 0.000000e+00 : f32
      %22 = vector.broadcast %cst : f32 to vector<16x128xf32>
      %23 = arith.select %21, %18, %22 : vector<16x128xi1>, vector<16x128xf32>
      %c0_10 = arith.constant 0 : index
      %c0_11 = arith.constant 0 : index
      %24 = vector.load %arg8[%c0_10, %c0_11] : memref<8x128xf32, #tpu.memory_space<vmem>>, vector<8x128xf32>
      %25 = vector.shape_cast %23 : vector<16x128xf32> to vector<2x8x128xf32>
      %cst_12 = arith.constant dense<0.000000e+00> : vector<8x128xf32>
      %26 = vector.multi_reduction <add>, %25, %cst_12 [0] : vector<2x8x128xf32> to vector<8x128xf32>
      %27 = arith.addf %24, %26 : vector<8x128xf32>
      %c0_13 = arith.constant 0 : index
      %c0_14 = arith.constant 0 : index
      %28 = vector.load %arg8[%c0_13, %c0_14] : memref<8x128xf32, #tpu.memory_space<vmem>>, vector<8x128xf32>
      tpu.vector_store %arg8[%c0_13, %c0_14], %27 {strides = array<i32>} : memref<8x128xf32, #tpu.memory_space<vmem>>, vector<8x128xf32>,
    } else {
    }
    %c2_i32_5 = arith.constant 2 : i32
    %12 = arith.cmpi eq, %arg0, %c2_i32_5 : i32
    %13 = arith.extui %12 : i1 to i32
    %c0_i32_6 = arith.constant 0 : i32
    %14 = arith.cmpi ne, %13, %c0_i32_6 : i32
    scf.if %14 {
      %c0 = arith.constant 0 : index
      %c0_7 = arith.constant 0 : index
      %15 = vector.load %arg6[%c0, %c0_7] : memref<8x128xf32, #tpu.memory_space<vmem>>, vector<8x128xf32>
      %16 = vector.shape_cast %15 : vector<8x128xf32> to vector<1x8x128xf32>
      %cst = arith.constant dense<0.000000e+00> : vector<1xf32>
      %17 = vector.multi_reduction <add>, %16, %cst [1, 2] : vector<1x8x128xf32> to vector<1xf32>
      %18 = vector.shape_cast %17 : vector<1xf32> to vector<1x1x1xf32>
      %19 = vector.extract %18[0, 0, 0] : f32 from vector<1x1x1xf32>
      %c0_8 = arith.constant 0 : index
      %20 = memref.load %arg5[%c0_8] : memref<3xf32, #tpu.memory_space<smem>>
      memref.store %19, %arg5[%c0_8] : memref<3xf32, #tpu.memory_space<smem>>
      %c0_9 = arith.constant 0 : index
      %c0_10 = arith.constant 0 : index
      %21 = vector.load %arg7[%c0_9, %c0_10] : memref<8x128xf32, #tpu.memory_space<vmem>>, vector<8x128xf32>
      %22 = vector.shape_cast %21 : vector<8x128xf32> to vector<1x8x128xf32>
      %cst_11 = arith.constant dense<0.000000e+00> : vector<1xf32>
      %23 = vector.multi_reduction <add>, %22, %cst_11 [1, 2] : vector<1x8x128xf32> to vector<1xf32>
      %24 = vector.shape_cast %23 : vector<1xf32> to vector<1x1x1xf32>
      %25 = vector.extract %24[0, 0, 0] : f32 from vector<1x1x1xf32>
      %c1 = arith.constant 1 : index
      %26 = memref.load %arg5[%c1] : memref<3xf32, #tpu.memory_space<smem>>
      memref.store %25, %arg5[%c1] : memref<3xf32, #tpu.memory_space<smem>>
      %c0_12 = arith.constant 0 : index
      %c0_13 = arith.constant 0 : index
      %27 = vector.load %arg8[%c0_12, %c0_13] : memref<8x128xf32, #tpu.memory_space<vmem>>, vector<8x128xf32>
      %28 = vector.shape_cast %27 : vector<8x128xf32> to vector<1x8x128xf32>
      %cst_14 = arith.constant dense<0.000000e+00> : vector<1xf32>
      %29 = vector.multi_reduction <add>, %28, %cst_14 [1, 2] : vector<1x8x128xf32> to vector<1xf32>
      %30 = vector.shape_cast %29 : vector<1xf32> to vector<1x1x1xf32>
      %31 = vector.extract %30[0, 0, 0] : f32 from vector<1x1x1xf32>
      %c2 = arith.constant 2 : index
      %32 = memref.load %arg5[%c2] : memref<3xf32, #tpu.memory_space<smem>>
      memref.store %31, %arg5[%c2] : memref<3xf32, #tpu.memory_space<smem>>
    } else {
    }
    return
  }
  func.func @transform_0(%arg0: i32) -> (i32, i32) {
    %c0_i32 = arith.constant 0 : i32
    %0 = arith.subi %arg0, %c0_i32 : i32
    %c0_i32_0 = arith.constant 0 : i32
    %c0_i32_1 = arith.constant 0 : i32
    %1 = arith.maxsi %c0_i32_0, %0 : i32
    %2 = arith.minsi %c0_i32_1, %1 : i32
    %c0_i32_2 = arith.constant 0 : i32
    %c0_i32_3 = arith.constant 0 : i32
    return %2, %c0_i32_2 : i32, i32
  }
  func.func @transform_1(%arg0: i32) -> (i32, i32) {
    %c1_i32 = arith.constant 1 : i32
    %0 = arith.subi %arg0, %c1_i32 : i32
    %c0_i32 = arith.constant 0 : i32
    %c0_i32_0 = arith.constant 0 : i32
    %1 = arith.maxsi %c0_i32, %0 : i32
    %2 = arith.minsi %c0_i32_0, %1 : i32
    %c0_i32_1 = arith.constant 0 : i32
    %c0_i32_2 = arith.constant 0 : i32
    return %2, %c0_i32_1 : i32, i32
  }
  func.func @transform_2(%arg0: i32) -> (i32, i32) {
    %c2_i32 = arith.constant 2 : i32
    %0 = arith.subi %arg0, %c2_i32 : i32
    %c0_i32 = arith.constant 0 : i32
    %c0_i32_0 = arith.constant 0 : i32
    %1 = arith.maxsi %c0_i32, %0 : i32
    %2 = arith.minsi %c0_i32_0, %1 : i32
    %c0_i32_1 = arith.constant 0 : i32
    %c0_i32_2 = arith.constant 0 : i32
    return %2, %c0_i32_1 : i32, i32
  }
  func.func @transform_3(%arg0: i32) -> (i32, i32) {
    %c2_i32 = arith.constant 2 : i32
    %0 = arith.subi %arg0, %c2_i32 : i32
    %c0_i32 = arith.constant 0 : i32
    %c0_i32_0 = arith.constant 0 : i32
    %1 = arith.maxsi %c0_i32, %0 : i32
    %2 = arith.minsi %c0_i32_0, %1 : i32
    %c0_i32_1 = arith.constant 0 : i32
    %c0_i32_2 = arith.constant 0 : i32
    return %2, %c0_i32_1 : i32, i32
  }
  func.func @transform_4(%arg0: i32) -> i32 {
    %c0_i32 = arith.constant 0 : i32
    %c0_i32_0 = arith.constant 0 : i32
    return %c0_i32 : i32
  }
}

</mosaic_0001>

<llo_original>
// kernel: tpu_custom_call.1
$region0: #{tpu_custom_call.1}
  #allocation0 [shape = 'u32[]', space=smem, size = 0x4, offset = 0x4, fixed_abs, tag = 'smem constant byte address 0x4 - core index']
  #allocation1 [shape = 'u32[72,128]{1,0:T(1,128)}', space=vmem, size = 0x9000, scoped, tag = 'internal scratch']
  #allocation2 [shape = 'f32[8,128]{1,0:T(8,128)}', space=vmem, size = 0x1000, scoped, tag = 'scratch operand']
  #allocation3 [shape = 'f32[8,128]{1,0:T(8,128)}', space=vmem, size = 0x1000, scoped, tag = 'scratch operand']
  #allocation4 [shape = 'f32[8,128]{1,0:T(8,128)}', space=vmem, size = 0x1000, scoped, tag = 'scratch operand']
  %s0 = inlined_call_operand.hbm [shape: f32[8,128], index: 0, kind: input, shape index: {}]
  %s1 = inlined_call_operand.hbm [shape: f32[2,128], index: 1, kind: input, shape index: {}]
  %s2 = inlined_call_operand.hbm [shape: f32[12,128], index: 2, kind: input, shape index: {}]
  %s3 = inlined_call_operand.hbm [shape: f32[12,128], index: 3, kind: input, shape index: {}]
  %s4 = inlined_call_operand.hbm [shape: f32[3], index: 4, kind: output, shape index: {}]
  %s5 = sld [smem:[#allocation0]]
  $region77: #{tpu_custom_call.1} parent=0
    _
  %s7 = ssub.s32 1, %s5
  %s8 = scalar_select 0, %s7, %s5
  $region1: #{tpu_custom_call.1} parent=0
    #allocation5 [shape = 'u8[8192]{0}', space=vmem, size = 0x2000, scoped, tag = 'input window, operand 0']
    #allocation6 [shape = 's32[2]{0}', space=sflag, size = 0x8, scoped, tag = 'scoped memory for tpu_custom_call.1']
    #allocation7 [shape = 's32[2]{0}', space=sflag, size = 0x8, scoped, tag = 'scoped memory for tpu_custom_call.1']
    #allocation8 [shape = 'u8[8192]{0}', space=vmem, size = 0x2000, scoped, tag = 'input window, operand 1']
    #allocation9 [shape = 's32[2]{0}', space=sflag, size = 0x8, scoped, tag = 'scoped memory for tpu_custom_call.1']
    #allocation10 [shape = 'u8[16384]{0}', space=vmem, size = 0x4000, scoped, tag = 'input window, operand 2']
    #allocation11 [shape = 'u8[16384]{0}', space=vmem, size = 0x4000, scoped, tag = 'input window, operand 3']
    #allocation12 [shape = 's32[2]{0}', space=sflag, size = 0x8, scoped, tag = 'scoped memory for tpu_custom_call.1']
    #allocation13 [shape = 'u8[512]{0}', space=smem, size = 0x200, scoped, tag = 'output window, operand 0, single buffered']
    %9 = vsyncpa [#allocation6], 0
    %s10 = scalar_lea.sflag [#allocation6], 1
    %11 = vsyncpa %s10, 0
    %12 = vsyncpa [#allocation9], 0
    %s13 = scalar_lea.sflag [#allocation9], 1
    %14 = vsyncpa %s13, 0
    %15 = vsyncpa [#allocation12], 0
    %s16 = scalar_lea.sflag [#allocation12], 1
    %17 = vsyncpa %s16, 0
    %18 = vsyncpa [#allocation7], 0
    loop: start=0, step=1, limit=5
    $region2: #{tpu_custom_call.1} parent=1 // loop_pre_header
      _
    $region3: #{tpu_custom_call.1} parent=1 // loop_header
      %s20 = sphi 0, %s24
      %p21 = scmp.ge.s32.totalorder %s20, 5
      %s38 = sphi 0, %s40
      %s41 = sphi 0, %s38
      %s42 = sphi 0, %s41
      %s58 = sphi 0, %s42
      %s74 = sphi 0, %s76
      %s77 = sphi 0, %s74
      %s78 = sphi 0, %s77
      %s94 = sphi 0, %s78
      %s110 = sphi 0, %s112
      %s113 = sphi 0, %s110
      %s114 = sphi 0, %s113
      %s130 = sphi 0, %s114
      %s146 = sphi 0, %s148
      %s149 = sphi 0, %s146
      %s150 = sphi 0, %s149
      %s166 = sphi 0, %s150
      %s170 = sphi 0, %s170
      %s172 = sphi 0, %s170
      %s173 = sphi 0, %s172
      %s187 = sphi 0, %s173
    $region4: #{tpu_custom_call.1} parent=1 // loop_header_branch
      %23 = sbr.rel (%p21) target = $region8
    $region5: #{tpu_custom_call.1} parent=1 // loop_body
      %s25 = ssub.s32 %s20, 1
      %s26 = ssub.s32 %s20, 2
      %s27 = sadd.s32 %s20, 1
      %p28 = scmp.gt.s32.totalorder %s20, 0
      %s29 = scalar_select %p28, %s20, 0
      %p30 = scmp.lt.s32.totalorder %s29, 0
      %s31 = scalar_select %p30, %s29, 0
      %p32 = scmp.gt.s32.totalorder %s27, 0
      %s33 = scalar_select %p32, %s27, 0
      %p34 = scmp.lt.s32.totalorder %s33, 0
      %s35 = scalar_select %p34, %s33, 0
      %s36 = ssub.s32 %s31, %s35
      %p37 = scmp.eq.s32.totalorder %s36, 0
      %s39 = sadd.s32 %s38, 1
      %s40 = scalar_select %p37, %s38, %s39
      %p43 = pneg %p37
      %p44 = scmp.eq.s32.totalorder %s20, 2
      %p45 = por %p43, %p44
      %p46 = scmp.ne.s32.totalorder %s38, %s41
      %p47 = scmp.eq.s32.totalorder %s20, 0
      %p48 = por %p46, %p47
      %p49 = scmp.ne.s32.totalorder %s38, %s41
      %p50 = scmp.eq.s32.totalorder %s25, 2
      %p51 = por %p49, %p50
      %p52 = scmp.ne.s32.totalorder %s41, %s42
      %p53 = scmp.eq.s32.totalorder %s25, 0
      %p54 = por %p52, %p53
      %p55 = scmp.ne.s32.totalorder %s41, %s42
      %p56 = scmp.eq.s32.totalorder %s26, 2
      %p57 = por %p55, %p56
      %p59 = scmp.ne.s32.totalorder %s42, %s58
      %p60 = scmp.eq.s32.totalorder %s26, 0
      %p61 = por %p59, %p60
      %s62 = ssub.s32 %s20, 1
      %p63 = scmp.gt.s32.totalorder %s62, 0
      %s64 = scalar_select %p63, %s62, 0
      %p65 = scmp.lt.s32.totalorder %s64, 0
      %s66 = scalar_select %p65, %s64, 0
      %s67 = ssub.s32 %s27, 1
      %p68 = scmp.gt.s32.totalorder %s67, 0
      %s69 = scalar_select %p68, %s67, 0
      %p70 = scmp.lt.s32.totalorder %s69, 0
      %s71 = scalar_select %p70, %s69, 0
      %s72 = ssub.s32 %s66, %s71
      %p73 = scmp.eq.s32.totalorder %s72, 0
      %s75 = sadd.s32 %s74, 1
      %s76 = scalar_select %p73, %s74, %s75
      %p79 = pneg %p73
      %p80 = scmp.eq.s32.totalorder %s20, 2
      %p81 = por %p79, %p80
      %p82 = scmp.ne.s32.totalorder %s74, %s77
      %p83 = scmp.eq.s32.totalorder %s20, 0
      %p84 = por %p82, %p83
      %p85 = scmp.ne.s32.totalorder %s74, %s77
      %p86 = scmp.eq.s32.totalorder %s25, 2
      %p87 = por %p85, %p86
      %p88 = scmp.ne.s32.totalorder %s77, %s78
      %p89 = scmp.eq.s32.totalorder %s25, 0
      %p90 = por %p88, %p89
      %p91 = scmp.ne.s32.totalorder %s77, %s78
      %p92 = scmp.eq.s32.totalorder %s26, 2
      %p93 = por %p91, %p92
      %p95 = scmp.ne.s32.totalorder %s78, %s94
      %p96 = scmp.eq.s32.totalorder %s26, 0
      %p97 = por %p95, %p96
      %s98 = ssub.s32 %s20, 2
      %p99 = scmp.gt.s32.totalorder %s98, 0
      %s100 = scalar_select %p99, %s98, 0
      %p101 = scmp.lt.s32.totalorder %s100, 0
      %s102 = scalar_select %p101, %s100, 0
      %s103 = ssub.s32 %s27, 2
      %p104 = scmp.gt.s32.totalorder %s103, 0
      %s105 = scalar_select %p104, %s103, 0
      %p106 = scmp.lt.s32.totalorder %s105, 0
      %s107 = scalar_select %p106, %s105, 0
      %s108 = ssub.s32 %s102, %s107
      %p109 = scmp.eq.s32.totalorder %s108, 0
      %s111 = sadd.s32 %s110, 1
      %s112 = scalar_select %p109, %s110, %s111
      %p115 = pneg %p109
      %p116 = scmp.eq.s32.totalorder %s20, 2
      %p117 = por %p115, %p116
      %p118 = scmp.ne.s32.totalorder %s110, %s113
      %p119 = scmp.eq.s32.totalorder %s20, 0
      %p120 = por %p118, %p119
      %p121 = scmp.ne.s32.totalorder %s110, %s113
      %p122 = scmp.eq.s32.totalorder %s25, 2
      %p123 = por %p121, %p122
      %p124 = scmp.ne.s32.totalorder %s113, %s114
      %p125 = scmp.eq.s32.totalorder %s25, 0
      %p126 = por %p124, %p125
      %p127 = scmp.ne.s32.totalorder %s113, %s114
      %p128 = scmp.eq.s32.totalorder %s26, 2
      %p129 = por %p127, %p128
      %p131 = scmp.ne.s32.totalorder %s114, %s130
      %p132 = scmp.eq.s32.totalorder %s26, 0
      %p133 = por %p131, %p132
      %s134 = ssub.s32 %s20, 2
      %p135 = scmp.gt.s32.totalorder %s134, 0
      %s136 = scalar_select %p135, %s134, 0
      %p137 = scmp.lt.s32.totalorder %s136, 0
      %s138 = scalar_select %p137, %s136, 0
      %s139 = ssub.s32 %s27, 2
      %p140 = scmp.gt.s32.totalorder %s139, 0
      %s141 = scalar_select %p140, %s139, 0
      %p142 = scmp.lt.s32.totalorder %s141, 0
      %s143 = scalar_select %p142, %s141, 0
      %s144 = ssub.s32 %s138, %s143
      %p145 = scmp.eq.s32.totalorder %s144, 0
      %s147 = sadd.s32 %s146, 1
      %s148 = scalar_select %p145, %s146, %s147
      %p151 = pneg %p145
      %p152 = scmp.eq.s32.totalorder %s20, 2
      %p153 = por %p151, %p152
      %p154 = scmp.ne.s32.totalorder %s146, %s149
      %p155 = scmp.eq.s32.totalorder %s20, 0
      %p156 = por %p154, %p155
      %p157 = scmp.ne.s32.totalorder %s146, %s149
      %p158 = scmp.eq.s32.totalorder %s25, 2
      %p159 = por %p157, %p158
      %p160 = scmp.ne.s32.totalorder %s149, %s150
      %p161 = scmp.eq.s32.totalorder %s25, 0
      %p162 = por %p160, %p161
      %p163 = scmp.ne.s32.totalorder %s149, %s150
      %p164 = scmp.eq.s32.totalorder %s26, 2
      %p165 = por %p163, %p164
      %p167 = scmp.ne.s32.totalorder %s150, %s166
      %p168 = scmp.eq.s32.totalorder %s26, 0
      %p169 = por %p167, %p168
      %s171 = sadd.s32 %s170, 1
      %p174 = scmp.eq.s32.totalorder %s20, 2
      %p175 = scmp.ne.s32.totalorder %s170, %s172
      %p176 = scmp.eq.s32.totalorder %s20, 0
      %p177 = por %p175, %p176
      %p178 = scmp.ne.s32.totalorder %s170, %s172
      %p179 = scmp.eq.s32.totalorder %s25, 2
      %p180 = por %p178, %p179
      %p181 = scmp.ne.s32.totalorder %s172, %s173
      %p182 = scmp.eq.s32.totalorder %s25, 0
      %p183 = por %p181, %p182
      %p184 = scmp.ne.s32.totalorder %s172, %s173
      %p185 = scmp.eq.s32.totalorder %s26, 2
      %p186 = por %p184, %p185
      %p188 = scmp.ne.s32.totalorder %s173, %s187
      %p189 = scmp.eq.s32.totalorder %s26, 0
      %p190 = por %p188, %p189
      %p191 = scmp.le.s32.totalorder 1, %s20
      %p192 = scmp.lt.s32.totalorder %s20, 4
      %p193 = pnand %p191, %p192
      %p194 = pneg %p193
      // Predicated region
      $region9: #{tpu_custom_call.1} parent=5 // pred_check
        _
      $region10: #{tpu_custom_call.1} parent=5 // pred_check_branch
        %196 = sbr.rel (%p193) target = $region12
      $region11: #{tpu_custom_call.1} parent=5 // pred_region
        %s197 = ssub.s32 %s20, 1
      $region12: #{tpu_custom_call.1} parent=5 // pred_fallthru
        _
      %p198 = scmp.lt.s32.totalorder %s20, 3
      // Predicated region
      $region13: #{tpu_custom_call.1} parent=5 // pred_check
        %p199 = pneg %p198
      $region14: #{tpu_custom_call.1} parent=5 // pred_check_branch
        %201 = sbr.rel (%p199) target = $region16
      $region15: #{tpu_custom_call.1} parent=5 // pred_region
        // Predicated region
        $region17: #{tpu_custom_call.1} parent=15 // pred_check
          %p202 = pneg %p48
        $region18: #{tpu_custom_call.1} parent=15 // pred_check_branch
          %204 = sbr.rel (%p202) target = $region20
        $region19: #{tpu_custom_call.1} parent=15 // pred_region
          %s205 = sand.u32 %s38, 1
          %s206 = scalar_lea.sflag [#allocation6], %s205
          %s207 = sand.u32 %s38, 1
          %s208 = smul.addr %s207, 8
          %s209 = scalar_lea.vmem [#allocation5], %s208
          %p210 = scmp.gt.s32.totalorder %s20, 0
          %s211 = scalar_select %p210, %s20, 0
          %p212 = scmp.lt.s32.totalorder %s211, 0
          %s213 = scalar_select %p212, %s211, 0
          %215 = vsyncadd %s206, 0
          %s216 = smul.addr %s213, 8
          %s217 = scalar_lea.hbm %s0, %s216
          %s219 = sshll.u32 %s217, 4
          %s220 = int_to_ptr.hbm [resolvable:$true] %s219
          %s221 = sshll.u32 %s209, 4
          %s222 = int_to_ptr.vmem [resolvable:$true] %s221
          %224 = dma.hbm_to_vmem [thread:$0]  %s220, 128, %s222, %s206
        $region20: #{tpu_custom_call.1} parent=15 // pred_fallthru
          _
        // Predicated region
        $region21: #{tpu_custom_call.1} parent=15 // pred_check
          %p225 = pneg %p84
        $region22: #{tpu_custom_call.1} parent=15 // pred_check_branch
          %227 = sbr.rel (%p225) target = $region24
        $region23: #{tpu_custom_call.1} parent=15 // pred_region
          %s228 = sand.u32 %s20, 1
          %s229 = scalar_lea.sflag [#allocation9], %s228
          %s230 = sand.u32 %s74, 1
          %s231 = smul.addr %s230, 8
          %s232 = scalar_lea.vmem [#allocation8], %s231
          %s233 = ssub.s32 %s20, 1
          %p234 = scmp.gt.s32.totalorder %s233, 0
          %s235 = scalar_select %p234, %s233, 0
          %p236 = scmp.lt.s32.totalorder %s235, 0
          %s237 = scalar_select %p236, %s235, 0
          %s238 = smul.u32 4, %s237
          %s239 = ssub.s32 1, %s238
          %s240 = smul.u32 2, %s239
          %s241 = ssub.s32 8, %s240
          %s242 = sshll.u32 %s241, 4
          %243 = vsyncadd %s229, %s242
          %p244 = scmp.ne.s32.totalorder 0, %s240
          %s245 = smul.addr %s238, 2
          %s246 = scalar_lea.hbm %s1, %s245
          %s247 = smul.u32 2, %s239
          %s248 = sshll.u32 %s246, 4
          %s249 = int_to_ptr.hbm [resolvable:$true] %s248
          %s250 = sshll.u32 %s232, 4
          %s251 = int_to_ptr.vmem [resolvable:$true] %s250
          %s252 = sshll.u32 %s247, 4
          %256 = dma.hbm_to_vmem [thread:$0]  (%p244), %s249, %s252, %s251, %s229, 32, 32, 2
        $region24: #{tpu_custom_call.1} parent=15 // pred_fallthru
          _
        // Predicated region
        $region25: #{tpu_custom_call.1} parent=15 // pred_check
          %p257 = pneg %p120
        $region26: #{tpu_custom_call.1} parent=15 // pred_check_branch
          %259 = sbr.rel (%p257) target = $region28
        $region27: #{tpu_custom_call.1} parent=15 // pred_region
          %s260 = sand.u32 %s20, 1
          %s261 = scalar_lea.sflag [#allocation9], %s260
          %s262 = sand.u32 %s110, 1
          %s263 = smul.addr %s262, 16
          %s264 = scalar_lea.vmem [#allocation10], %s263
          %s265 = ssub.s32 %s20, 2
          %p266 = scmp.gt.s32.totalorder %s265, 0
          %s267 = scalar_select %p266, %s265, 0
          %p268 = scmp.lt.s32.totalorder %s267, 0
          %s269 = scalar_select %p268, %s267, 0
          %s270 = smul.u32 2, %s269
          %272 = vsyncadd %s261, 0
          %s273 = smul.addr %s270, 8
          %s274 = scalar_lea.hbm %s2, %s273
          %s275 = sshll.u32 %s274, 4
          %s276 = int_to_ptr.hbm [resolvable:$true] %s275
          %s277 = sshll.u32 %s264, 4
          %s278 = int_to_ptr.vmem [resolvable:$true] %s277
          %283 = dma.hbm_to_vmem [thread:$0]  %s276, 256, %s278, %s261, 128, 128, 8
        $region28: #{tpu_custom_call.1} parent=15 // pred_fallthru
          _
        // Predicated region
        $region29: #{tpu_custom_call.1} parent=15 // pred_check
          %p284 = pneg %p156
        $region30: #{tpu_custom_call.1} parent=15 // pred_check_branch
          %286 = sbr.rel (%p284) target = $region32
        $region31: #{tpu_custom_call.1} parent=15 // pred_region
          %s287 = sand.u32 %s146, 1
          %s288 = scalar_lea.sflag [#allocation12], %s287
          %s289 = sand.u32 %s146, 1
          %s290 = smul.addr %s289, 16
          %s291 = scalar_lea.vmem [#allocation11], %s290
          %s292 = ssub.s32 %s20, 2
          %p293 = scmp.gt.s32.totalorder %s292, 0
          %s294 = scalar_select %p293, %s292, 0
          %p295 = scmp.lt.s32.totalorder %s294, 0
          %s296 = scalar_select %p295, %s294, 0
          %s297 = smul.u32 2, %s296
          %299 = vsyncadd %s288, 0
          %s300 = smul.addr %s297, 8
          %s301 = scalar_lea.hbm %s3, %s300
          %s302 = sshll.u32 %s301, 4
          %s303 = int_to_ptr.hbm [resolvable:$true] %s302
          %s304 = sshll.u32 %s291, 4
          %s305 = int_to_ptr.vmem [resolvable:$true] %s304
          %310 = dma.hbm_to_vmem [thread:$0]  %s303, 256, %s305, %s288, 128, 128, 8
        $region32: #{tpu_custom_call.1} parent=15 // pred_fallthru
          _
      $region16: #{tpu_custom_call.1} parent=5 // pred_fallthru
        _
      %p311 = scmp.le.s32.totalorder 1, %s20
      %p312 = scmp.lt.s32.totalorder %s20, 4
      %p313 = pnand %p311, %p312
      %p314 = pneg %p313
      // Predicated region
      $region33: #{tpu_custom_call.1} parent=5 // pred_check
        _
      $region34: #{tpu_custom_call.1} parent=5 // pred_check_branch
        %316 = sbr.rel (%p313) target = $region36
      $region35: #{tpu_custom_call.1} parent=5 // pred_region
        %s317 = ssub.s32 %s20, 1
        %s318 = sand.u32 %s41, 1
        %s319 = scalar_lea.sflag [#allocation6], %s318
        %s320 = sand.u32 %s41, 1
        %s321 = smul.addr %s320, 8
        %s322 = scalar_lea.vmem [#allocation5], %s321
        // Predicated region
        $region37: #{tpu_custom_call.1} parent=35 // pred_check
          %p323 = pneg %p54
        $region38: #{tpu_custom_call.1} parent=35 // pred_check_branch
          %325 = sbr.rel (%p323) target = $region40
        $region39: #{tpu_custom_call.1} parent=35 // pred_region
          %327 = dma.done %s319, 128
        $region40: #{tpu_custom_call.1} parent=35 // pred_fallthru
          _
        %s328 = sand.u32 %s25, 1
        %s329 = scalar_lea.sflag [#allocation9], %s328
        %s330 = sand.u32 %s77, 1
        %s331 = smul.addr %s330, 8
        %s332 = scalar_lea.vmem [#allocation8], %s331
        // Predicated region
        $region41: #{tpu_custom_call.1} parent=35 // pred_check
          %p333 = pneg %p90
        $region42: #{tpu_custom_call.1} parent=35 // pred_check_branch
          %335 = sbr.rel (%p333) target = $region44
        $region43: #{tpu_custom_call.1} parent=35 // pred_region
          %337 = dma.done %s329, 128
        $region44: #{tpu_custom_call.1} parent=35 // pred_fallthru
          _
        %s338 = sand.u32 %s25, 1
        %s339 = scalar_lea.sflag [#allocation9], %s338
        %s340 = sand.u32 %s113, 1
        %s341 = smul.addr %s340, 16
        %s342 = scalar_lea.vmem [#allocation10], %s341
        // Predicated region
        $region45: #{tpu_custom_call.1} parent=35 // pred_check
          %p343 = pneg %p126
        $region46: #{tpu_custom_call.1} parent=35 // pred_check_branch
          %345 = sbr.rel (%p343) target = $region48
        $region47: #{tpu_custom_call.1} parent=35 // pred_region
          %347 = dma.done %s339, 256
        $region48: #{tpu_custom_call.1} parent=35 // pred_fallthru
          _
        %s348 = sand.u32 %s149, 1
        %s349 = scalar_lea.sflag [#allocation12], %s348
        %s350 = sand.u32 %s149, 1
        %s351 = smul.addr %s350, 16
        %s352 = scalar_lea.vmem [#allocation11], %s351
        // Predicated region
        $region49: #{tpu_custom_call.1} parent=35 // pred_check
          %p353 = pneg %p162
        $region50: #{tpu_custom_call.1} parent=35 // pred_check_branch
          %355 = sbr.rel (%p353) target = $region52
        $region51: #{tpu_custom_call.1} parent=35 // pred_region
          %357 = dma.done %s349, 256
        $region52: #{tpu_custom_call.1} parent=35 // pred_fallthru
          _
        %s358 = sand.u32 %s41, 1
        %s359 = scalar_lea.sflag [#allocation6], %s358
        %s360 = sand.u32 %s41, 1
        %s361 = smul.addr %s360, 8
        %s362 = scalar_lea.vmem [#allocation5], %s361
        %p363 = pneg %p54
        %p364 = pneg %p51
        %s365 = sand.u32 %s25, 1
        %s366 = scalar_lea.sflag [#allocation9], %s365
        %s367 = sand.u32 %s77, 1
        %s368 = smul.addr %s367, 8
        %s369 = scalar_lea.vmem [#allocation8], %s368
        %p370 = pneg %p90
        %p371 = pneg %p87
        %s372 = sand.u32 %s25, 1
        %s373 = scalar_lea.sflag [#allocation9], %s372
        %s374 = sand.u32 %s113, 1
        %s375 = smul.addr %s374, 16
        %s376 = scalar_lea.vmem [#allocation10], %s375
        %p377 = pneg %p126
        %p378 = pneg %p123
        %s379 = sand.u32 %s149, 1
        %s380 = scalar_lea.sflag [#allocation12], %s379
        %s381 = sand.u32 %s149, 1
        %s382 = smul.addr %s381, 16
        %s383 = scalar_lea.vmem [#allocation11], %s382
        %p384 = pneg %p162
        %p385 = pneg %p159
        %p386 = pneg %p183
        %p387 = pneg %p180
        %p388 = scmp.gt.s32.totalorder %s25, 0
        %s389 = scalar_select %p388, %s25, 0
        %p390 = scmp.lt.s32.totalorder %s389, 0
        %s391 = scalar_select %p390, %s389, 0
        %s392 = ssub.s32 %s25, 1
        %p393 = scmp.gt.s32.totalorder %s392, 0
        %s394 = scalar_select %p393, %s392, 0
        %p395 = scmp.lt.s32.totalorder %s394, 0
        %s396 = scalar_select %p395, %s394, 0
        %s397 = smul.u32 4, %s396
        %s398 = ssub.s32 1, %s397
        %s399 = smul.u32 2, %s398
        %s400 = ssub.s32 %s25, 2
        %p401 = scmp.gt.s32.totalorder %s400, 0
        %s402 = scalar_select %p401, %s400, 0
        %p403 = scmp.lt.s32.totalorder %s402, 0
        %s404 = scalar_select %p403, %s402, 0
        %s405 = smul.u32 2, %s404
        %s406 = ssub.s32 %s25, 2
        %p407 = scmp.gt.s32.totalorder %s406, 0
        %s408 = scalar_select %p407, %s406, 0
        %p409 = scmp.lt.s32.totalorder %s408, 0
        %s410 = scalar_select %p409, %s408, 0
        %s411 = smul.u32 2, %s410
        %p412 = scmp.eq.s32.totalorder %s25, 0
        // Predicated region
        $region53: #{tpu_custom_call.1} parent=35 // pred_check
          %p413 = pneg %p412
        $region54: #{tpu_custom_call.1} parent=35 // pred_check_branch
          %415 = sbr.rel (%p413) target = $region56
        $region55: #{tpu_custom_call.1} parent=35 // pred_region
          %416 = vst [vmem:[#allocation2] sm:$0xff] 0.0
          %417 = vst [vmem:[#allocation3] sm:$0xff] 0.0
          %418 = vst [vmem:[#allocation4] sm:$0xff] 0.0
          %v419 = vld [vmem:[%s322] sm:$0xff]
          %v420 = vld [vmem:[#allocation2] sm:$0xff]
          %v421 = vlog2.pop %v419
          %v422 = vmul.f32 %v421, 0.6931472
          %v423 = vadd.f32 %v422, 0.0
          %v424 = vadd.f32 %v420, %v423
          %425 = vst [vmem:[#allocation2] sm:$0xff] %v424
        $region56: #{tpu_custom_call.1} parent=35 // pred_fallthru
          _
        %p426 = scmp.eq.s32.totalorder %s25, 1
        // Predicated region
        $region57: #{tpu_custom_call.1} parent=35 // pred_check
          %p427 = pneg %p426
        $region58: #{tpu_custom_call.1} parent=35 // pred_check_branch
          %429 = sbr.rel (%p427) target = $region60
        $region59: #{tpu_custom_call.1} parent=35 // pred_region
          %v430 = vld [vmem:[%s332] sm:$0xff]
          %v431 = vlaneseq
          %v432 = vshrl.u32 %v431, 7
          %vm433 = vcmp.lt.s32.totalorder %v432, 2
          %v434 = vsel %vm433, %v430, 1.0
          %v435 = vld [vmem:[#allocation3] sm:$0xff]
          %v436 = vlog2.pop %v434
          %v437 = vmul.f32 %v436, 0.6931472
          %v438 = vadd.f32 %v437, 0.0
          %v439 = vadd.f32 %v435, %v438
          %440 = vst [vmem:[#allocation3] sm:$0xff] %v439
        $region60: #{tpu_custom_call.1} parent=35 // pred_fallthru
          _
        %p441 = scmp.eq.s32.totalorder %s25, 2
        // Predicated region
        $region61: #{tpu_custom_call.1} parent=35 // pred_check
          %p442 = pneg %p441
        $region62: #{tpu_custom_call.1} parent=35 // pred_check_branch
          %444 = sbr.rel (%p442) target = $region64
        $region63: #{tpu_custom_call.1} parent=35 // pred_region
          %v445 = vld [vmem:[%s342] sm:$0xff]
          %v446 = vld [vmem:[%s342 + $0x8] sm:$0xff]
          %v447 = vld [vmem:[%s352] sm:$0xff]
          %v448 = vld [vmem:[%s352 + $0x8] sm:$0xff]
          %v449 = vsub.f32 %v445, %v447
          %v450 = vsub.f32 %v446, %v448
          %v451 = vmul.f32 %v449, %v449
          %v452 = vmul.f32 %v450, %v450
          %v453 = vlaneseq
          %v454 = vshrl.u32 %v453, 7
          %v455 = vadd.s32 %v454, 8
          %vm456 = vcmp.lt.s32.totalorder %v454, 12
          %vm457 = vcmp.lt.s32.totalorder %v455, 12
          %v458 = vsel %vm456, %v451, 0.0
          %v459 = vsel %vm457, %v452, 0.0
          %v460 = vld [vmem:[#allocation4] sm:$0xff]
          %v461 = vadd.f32 %v458, %v459
          %v462 = vadd.f32 %v460, %v461
          %463 = vst [vmem:[#allocation4] sm:$0xff] %v462
          %v464 = vld [vmem:[#allocation2] sm:$0xff]
          %465 = vadd.xlane.f32.xlu0 %v464
          %v466 = vpop.xlane.xlu0 %465
          %v467 = vrot.slane %v466, 4
          %v468 = vadd.f32 %v466, %v467
          %v469 = vrot.slane %v468, 2
          %v470 = vadd.f32 %v468, %v469
          %v471 = vrot.slane %v470, 1
          %v472 = vadd.f32 %v470, %v471
          %s473 = vtos %v472
          %s474 = scalar_lea.smem [#allocation13], 0
          %475 = sst [smem:[%s474]] %s473
          %v476 = vld [vmem:[#allocation3] sm:$0xff]
          %477 = vadd.xlane.f32.xlu0 %v476
          %v478 = vpop.xlane.xlu0 %477
          %v479 = vrot.slane %v478, 4
          %v480 = vadd.f32 %v478, %v479
          %v481 = vrot.slane %v480, 2
          %v482 = vadd.f32 %v480, %v481
          %v483 = vrot.slane %v482, 1
          %v484 = vadd.f32 %v482, %v483
          %s485 = vtos %v484
          %s486 = scalar_lea.smem [#allocation13], 1
          %487 = sst [smem:[%s486]] %s485
          %v488 = vld [vmem:[#allocation4] sm:$0xff]
          %489 = vadd.xlane.f32.xlu0 %v488
          %v490 = vpop.xlane.xlu0 %489
          %v491 = vrot.slane %v490, 4
          %v492 = vadd.f32 %v490, %v491
          %v493 = vrot.slane %v492, 2
          %v494 = vadd.f32 %v492, %v493
          %v495 = vrot.slane %v494, 1
          %v496 = vadd.f32 %v494, %v495
          %s497 = vtos %v496
          %s498 = scalar_lea.smem [#allocation13], 2
          %499 = sst [smem:[%s498]] %s497
        $region64: #{tpu_custom_call.1} parent=35 // pred_fallthru
          _
        // Predicated region
        $region65: #{tpu_custom_call.1} parent=35 // pred_check
          %p500 = pneg %p180
        $region66: #{tpu_custom_call.1} parent=35 // pred_check_branch
          %502 = sbr.rel (%p500) target = $region68
        $region67: #{tpu_custom_call.1} parent=35 // pred_region
          %504 = vsyncadd [#allocation7], 0
          %s506 = sshll.u32 %s4, 4
          %s507 = int_to_ptr.hbm [resolvable:$true] %s506
          %509 = dma.smem_to_hbm [#allocation13], 16, %s507, [#allocation7]
        $region68: #{tpu_custom_call.1} parent=35 // pred_fallthru
          _
        // Predicated region
        $region69: #{tpu_custom_call.1} parent=35 // pred_check
          %p510 = pneg %p180
        $region70: #{tpu_custom_call.1} parent=35 // pred_check_branch
          %512 = sbr.rel (%p510) target = $region72
        $region71: #{tpu_custom_call.1} parent=35 // pred_region
          %514 = dma.done [#allocation7], 16
        $region72: #{tpu_custom_call.1} parent=35 // pred_fallthru
          _
        %515 = sfence
      $region36: #{tpu_custom_call.1} parent=5 // pred_fallthru
        _
      %p516 = scmp.le.s32.totalorder 2, %s20
      // Predicated region
      $region73: #{tpu_custom_call.1} parent=5 // pred_check
        %p517 = pneg %p516
      $region74: #{tpu_custom_call.1} parent=5 // pred_check_branch
        %519 = sbr.rel (%p517) target = $region76
      $region75: #{tpu_custom_call.1} parent=5 // pred_region
        %s520 = ssub.s32 %s20, 2
      $region76: #{tpu_custom_call.1} parent=5 // pred_fallthru
        _
    $region6: #{tpu_custom_call.1} parent=1 // loop_footer
      %s24 = sadd.s32 1, %s20
    $region7: #{tpu_custom_call.1} parent=1 // loop_footer_branch
      %19 = sbr.rel target = $region3
    $region8: #{tpu_custom_call.1} parent=1 // loop_exit
      _
    %521 = vsyncpa [#allocation6], 1
    %s522 = scalar_lea.sflag [#allocation6], 1
    %523 = vsyncpa %s522, 1
    %524 = vsyncpa [#allocation9], 1
    %s525 = scalar_lea.sflag [#allocation9], 1
    %526 = vsyncpa %s525, 1
    %527 = vsyncpa [#allocation12], 1
    %s528 = scalar_lea.sflag [#allocation12], 1
    %529 = vsyncpa %s528, 1
    %530 = vsyncpa [#allocation7], 1
    %s531 = scalar_lea.sflag [#allocation7], 1
    %532 = vsyncpa %s531, 1

</llo_original>
